<compile_context>
chip_gen: v5e
topology: v5e:2x2
jax: 0.10.0
libtpu: 0.0.40
codegen_flags: <defaults>
</compile_context>

<pallas_src>
import jax
import jax.numpy as jnp
from jax.experimental import pallas as pl
from jax.experimental.pallas import tpu as pltpu


LANE = 128   # lane width: last dims padded to multiples of 128 (lane-dense loads/stores)
TB = 128     # batch tile: full MXU M dimension, multiple of 8/16 sublanes


def _round_up(n, m):
    return (n + m - 1) // m * m


def subnet_kernel(x_ref, w1_ref, b1_ref, w2_ref, b2_ref, w3_ref, b3_ref,
                  y2_ref, y3_ref):
    # Dropout is identity in eval/inference mode.
    # TODO(synk): training-mode dropout (random mask via pltpu.prng_*) omitted.
    x = x_ref[...]                                                   # bf16 (TB, in_p)
    # Layer 1: bf16 MXU matmul, f32 accumulation; bias add + tanh in f32.
    h1 = jnp.dot(x, w1_ref[...], preferred_element_type=jnp.float32) + b1_ref[...]
    y1 = jnp.tanh(h1).astype(jnp.bfloat16)
    # Layer 2
    h2 = jnp.dot(y1, w2_ref[...], preferred_element_type=jnp.float32) + b2_ref[...]
    y2 = jnp.tanh(h2)
    # Layer 3 (no activation)
    h3 = jnp.dot(y2.astype(jnp.bfloat16), w3_ref[...],
                 preferred_element_type=jnp.float32) + b3_ref[...]
    y2_ref[...] = y2.astype(y2_ref.dtype)
    y3_ref[...] = h3.astype(y3_ref.dtype)


def subnet_forward(x, params):
    """x: (B, in_size) float32.  Returns (y2: (B, hidden), y3: (B, n_class)) in float32."""
    w1, b1, w2, b2, w3, b3 = params
    B, in_size = x.shape
    hidden = w1.shape[1]
    n_class = w3.shape[1]

    # Padded (lane-dense) dims and batch tiling.
    in_p = _round_up(in_size, LANE)
    h_p = _round_up(hidden, LANE)
    c_p = _round_up(n_class, LANE)
    b_p = _round_up(B, TB)
    grid = (b_p // TB,)

    def pad2(a, rows, cols):
        return jnp.pad(a, ((0, rows - a.shape[0]), (0, cols - a.shape[1])))

    # Zero-pad weights/inputs, cast matmul operands to bf16 (halves HBM traffic,
    # doubles MXU rate on v6e/v7x); zero padding keeps padded lanes exactly zero.
    x_p = pad2(x, b_p, in_p).astype(jnp.bfloat16)
    w1p = pad2(w1, in_p, h_p).astype(jnp.bfloat16)
    w2p = pad2(w2, h_p, h_p).astype(jnp.bfloat16)
    w3p = pad2(w3, h_p, c_p).astype(jnp.bfloat16)
    b1p = pad2(b1, 1, h_p)   # biases stay f32
    b2p = pad2(b2, 1, h_p)
    b3p = pad2(b3, 1, c_p)

    # Weights/biases: same block every grid step -> VMEM-resident across the batch loop.
    resident = lambda shape: pl.BlockSpec(shape, lambda i: (0,) * len(shape))
    # Activations/outputs: tiled along the batch grid axis (auto double-buffered DMAs).
    tiled = lambda cols: pl.BlockSpec((TB, cols), lambda i: (i, 0))

    # Explicit VMEM budget: resident weights/biases + double-buffered x/y2/y3 tiles
    # (+ headroom). Sized to stay well within v7x's 64 MiB physical VMEM.
    weight_bytes = 2 * (in_p * h_p + h_p * h_p + h_p * c_p) + 4 * (2 * h_p + c_p)
    tile_bytes = 2 * (TB * in_p * 2 + TB * h_p * 4 + TB * c_p * 4)
    vmem_bytes = min(48 * 1024 * 1024, 2 * (weight_bytes + tile_bytes) + (1 << 20))

    cost = pl.CostEstimate(
        flops=2 * B * (in_size * hidden + hidden * hidden + hidden * n_class),
        transcendentals=2 * B * hidden,
        bytes_accessed=(x.size + w1.size + w2.size + w3.size) * 2
        + (b1.size + b2.size + b3.size) * 4
        + B * (hidden + n_class) * 4,
    )

    y2_p, y3_p = pl.pallas_call(
        subnet_kernel,
        out_shape=(
            jax.ShapeDtypeStruct((b_p, h_p), jnp.float32),
            jax.ShapeDtypeStruct((b_p, c_p), jnp.float32),
        ),
        grid=grid,
        in_specs=[
            tiled(in_p),
            resident((in_p, h_p)), resident((1, h_p)),
            resident((h_p, h_p)), resident((1, h_p)),
            resident((h_p, c_p)), resident((1, c_p)),
        ],
        out_specs=(
            tiled(h_p),
            tiled(c_p),
        ),
        compiler_params=pltpu.CompilerParams(
            dimension_semantics=("parallel",),   # batch axis -> both TCs on v7x
            vmem_limit_bytes=int(vmem_bytes),
        ),
        cost_estimate=cost,
    )(x_p, w1p, b1p, w2p, b2p, w3p, b3p)

    # Slice padding off (padded rows/lanes never touch valid outputs).
    return y2_p[:B, :hidden], y3_p[:B, :n_class]


def init_params(key, in_size, hidden_size, n_class):
    """Deterministic init mimicking torch.nn.Linear (uniform +/- 1/sqrt(fan_in)).
    Weights are stored transposed: (in, out), so the kernel computes x @ W + b."""
    ks = jax.random.split(key, 6)

    def lin(kw, kb, fan_in, fan_out):
        bound = 1.0 / jnp.sqrt(fan_in)
        w = jax.random.uniform(kw, (fan_in, fan_out), jnp.float32, -bound, bound)
        b = jax.random.uniform(kb, (1, fan_out), jnp.float32, -bound, bound)
        return w, b

    w1, b1 = lin(ks[0], ks[1], in_size, hidden_size)
    w2, b2 = lin(ks[2], ks[3], hidden_size, hidden_size)
    w3, b3 = lin(ks[4], ks[5], hidden_size, n_class)
    return (w1, b1, w2, b2, w3, b3)


def subnet_ref(x, params):
    w1, b1, w2, b2, w3, b3 = params
    y1 = jnp.tanh(x @ w1 + b1)
    y2 = jnp.tanh(y1 @ w2 + b2)
    y3 = y2 @ w3 + b3
    return y2, y3


if __name__ == "__main__":
    B, in_size, hidden_size, n_class = 8, 16, 32, 4
    key = jax.random.PRNGKey(0)
    kx, kp = jax.random.split(key)
    x = jax.random.normal(kx, (B, in_size), jnp.float32)
    params = init_params(kp, in_size, hidden_size, n_class)

    y2, y3 = subnet_forward(x, params)
    y2 = jax.block_until_ready(y2)
    y3 = jax.block_until_ready(y3)

    # Reference is pure f32; kernel uses bf16 operands with f32 accumulation,
    # so compare with a bf16-appropriate tolerance.
    y2_ref, y3_ref = subnet_ref(x, params)
    assert y2.shape == (B, hidden_size) and y3.shape == (B, n_class)
    assert jnp.allclose(y2, y2_ref, atol=3e-2, rtol=3e-2), "y2 mismatch"
    assert jnp.allclose(y3, y3_ref, atol=3e-2, rtol=3e-2), "y3 mismatch"
    print("KERNEL_OK")
</pallas_src>

<mosaic_0001>
module attributes {stable_mosaic.version = 11 : i64} {
  func.func @subnet_kernel(%arg0: i32, %arg1: memref<128x128xbf16, #tpu.memory_space<vmem>>, %arg2: memref<128x128xbf16, #tpu.memory_space<vmem>>, %arg3: memref<1x128xf32, #tpu.memory_space<vmem>>, %arg4: memref<128x128xbf16, #tpu.memory_space<vmem>>, %arg5: memref<1x128xf32, #tpu.memory_space<vmem>>, %arg6: memref<128x128xbf16, #tpu.memory_space<vmem>>, %arg7: memref<1x128xf32, #tpu.memory_space<vmem>>, %arg8: memref<128x128xf32, #tpu.memory_space<vmem>>, %arg9: memref<128x128xf32, #tpu.memory_space<vmem>>) attributes {dimension_semantics = [#tpu.dimension_semantics<parallel>], iteration_bounds = array<i64: 1>, scalar_prefetch = 0 : i64, scratch_operands = 0 : i64, tpu.core_type = #tpu.core_type<tc>, window_params = [{transform_indices = @transform_0, window_bounds = array<i64: 128, 128>}, {pipeline_mode = #tpu.pipeline_mode<synchronous>, transform_indices = @transform_1, window_bounds = array<i64: 128, 128>}, {pipeline_mode = #tpu.pipeline_mode<synchronous>, transform_indices = @transform_2, window_bounds = array<i64: 1, 128>}, {pipeline_mode = #tpu.pipeline_mode<synchronous>, transform_indices = @transform_3, window_bounds = array<i64: 128, 128>}, {pipeline_mode = #tpu.pipeline_mode<synchronous>, transform_indices = @transform_4, window_bounds = array<i64: 1, 128>}, {pipeline_mode = #tpu.pipeline_mode<synchronous>, transform_indices = @transform_5, window_bounds = array<i64: 128, 128>}, {pipeline_mode = #tpu.pipeline_mode<synchronous>, transform_indices = @transform_6, window_bounds = array<i64: 1, 128>}, {transform_indices = @transform_7, window_bounds = array<i64: 128, 128>}, {transform_indices = @transform_8, window_bounds = array<i64: 128, 128>}]} {
    %c0 = arith.constant 0 : index
    %c0_0 = arith.constant 0 : index
    %0 = vector.load %arg1[%c0, %c0_0] : memref<128x128xbf16, #tpu.memory_space<vmem>>, vector<128x128xbf16>
    %c0_1 = arith.constant 0 : index
    %c0_2 = arith.constant 0 : index
    %1 = vector.load %arg2[%c0_1, %c0_2] : memref<128x128xbf16, #tpu.memory_space<vmem>>, vector<128x128xbf16>
    %cst = arith.constant dense<0.000000e+00> : vector<128x128xf32>
    %2 = tpu.matmul %0, %1, %cst {dimension_numbers = #tpu.dot_dimension_numbers<[1], [0], [0], [1], [0, 0, 1, 1], [], []>} : vector<128x128xbf16>, vector<128x128xbf16>, vector<128x128xf32> -> vector<128x128xf32>
    %c0_3 = arith.constant 0 : index
    %c0_4 = arith.constant 0 : index
    %3 = vector.load %arg3[%c0_3, %c0_4] : memref<1x128xf32, #tpu.memory_space<vmem>>, vector<1x128xf32>
    %4 = vector.broadcast %3 : vector<1x128xf32> to vector<128x128xf32>
    %5 = arith.addf %2, %4 : vector<128x128xf32>
    %6 = math.tanh %5 : vector<128x128xf32>
    %7 = arith.truncf %6 : vector<128x128xf32> to vector<128x128xbf16>
    %c0_5 = arith.constant 0 : index
    %c0_6 = arith.constant 0 : index
    %8 = vector.load %arg4[%c0_5, %c0_6] : memref<128x128xbf16, #tpu.memory_space<vmem>>, vector<128x128xbf16>
    %cst_7 = arith.constant dense<0.000000e+00> : vector<128x128xf32>
    %9 = tpu.matmul %7, %8, %cst_7 {dimension_numbers = #tpu.dot_dimension_numbers<[1], [0], [0], [1], [0, 0, 1, 1], [], []>} : vector<128x128xbf16>, vector<128x128xbf16>, vector<128x128xf32> -> vector<128x128xf32>
    %c0_8 = arith.constant 0 : index
    %c0_9 = arith.constant 0 : index
    %10 = vector.load %arg5[%c0_8, %c0_9] : memref<1x128xf32, #tpu.memory_space<vmem>>, vector<1x128xf32>
    %11 = vector.broadcast %10 : vector<1x128xf32> to vector<128x128xf32>
    %12 = arith.addf %9, %11 : vector<128x128xf32>
    %13 = math.tanh %12 : vector<128x128xf32>
    %14 = arith.truncf %13 : vector<128x128xf32> to vector<128x128xbf16>
    %c0_10 = arith.constant 0 : index
    %c0_11 = arith.constant 0 : index
    %15 = vector.load %arg6[%c0_10, %c0_11] : memref<128x128xbf16, #tpu.memory_space<vmem>>, vector<128x128xbf16>
    %cst_12 = arith.constant dense<0.000000e+00> : vector<128x128xf32>
    %16 = tpu.matmul %14, %15, %cst_12 {dimension_numbers = #tpu.dot_dimension_numbers<[1], [0], [0], [1], [0, 0, 1, 1], [], []>} : vector<128x128xbf16>, vector<128x128xbf16>, vector<128x128xf32> -> vector<128x128xf32>
    %c0_13 = arith.constant 0 : index
    %c0_14 = arith.constant 0 : index
    %17 = vector.load %arg7[%c0_13, %c0_14] : memref<1x128xf32, #tpu.memory_space<vmem>>, vector<1x128xf32>
    %18 = vector.broadcast %17 : vector<1x128xf32> to vector<128x128xf32>
    %19 = arith.addf %16, %18 : vector<128x128xf32>
    %c0_15 = arith.constant 0 : index
    %c0_16 = arith.constant 0 : index
    %20 = vector.load %arg8[%c0_15, %c0_16] : memref<128x128xf32, #tpu.memory_space<vmem>>, vector<128x128xf32>
    tpu.vector_store %arg8[%c0_15, %c0_16], %13 {strides = array<i32>} : memref<128x128xf32, #tpu.memory_space<vmem>>, vector<128x128xf32>,
    %c0_17 = arith.constant 0 : index
    %c0_18 = arith.constant 0 : index
    %21 = vector.load %arg9[%c0_17, %c0_18] : memref<128x128xf32, #tpu.memory_space<vmem>>, vector<128x128xf32>
    tpu.vector_store %arg9[%c0_17, %c0_18], %19 {strides = array<i32>} : memref<128x128xf32, #tpu.memory_space<vmem>>, vector<128x128xf32>,
    return
  }
  func.func @transform_0(%arg0: i32) -> (i32, i32) {
    %c0_i32 = arith.constant 0 : i32
    %c0_i32_0 = arith.constant 0 : i32
    return %arg0, %c0_i32 : i32, i32
  }
  func.func @transform_1(%arg0: i32) -> (i32, i32) {
    %c0_i32 = arith.constant 0 : i32
    %c0_i32_0 = arith.constant 0 : i32
    %c0_i32_1 = arith.constant 0 : i32
    return %c0_i32, %c0_i32_0 : i32, i32
  }
  func.func @transform_2(%arg0: i32) -> (i32, i32) {
    %c0_i32 = arith.constant 0 : i32
    %c0_i32_0 = arith.constant 0 : i32
    %c0_i32_1 = arith.constant 0 : i32
    return %c0_i32, %c0_i32_0 : i32, i32
  }
  func.func @transform_3(%arg0: i32) -> (i32, i32) {
    %c0_i32 = arith.constant 0 : i32
    %c0_i32_0 = arith.constant 0 : i32
    %c0_i32_1 = arith.constant 0 : i32
    return %c0_i32, %c0_i32_0 : i32, i32
  }
  func.func @transform_4(%arg0: i32) -> (i32, i32) {
    %c0_i32 = arith.constant 0 : i32
    %c0_i32_0 = arith.constant 0 : i32
    %c0_i32_1 = arith.constant 0 : i32
    return %c0_i32, %c0_i32_0 : i32, i32
  }
  func.func @transform_5(%arg0: i32) -> (i32, i32) {
    %c0_i32 = arith.constant 0 : i32
    %c0_i32_0 = arith.constant 0 : i32
    %c0_i32_1 = arith.constant 0 : i32
    return %c0_i32, %c0_i32_0 : i32, i32
  }
  func.func @transform_6(%arg0: i32) -> (i32, i32) {
    %c0_i32 = arith.constant 0 : i32
    %c0_i32_0 = arith.constant 0 : i32
    %c0_i32_1 = arith.constant 0 : i32
    return %c0_i32, %c0_i32_0 : i32, i32
  }
  func.func @transform_7(%arg0: i32) -> (i32, i32) {
    %c0_i32 = arith.constant 0 : i32
    %c0_i32_0 = arith.constant 0 : i32
    return %arg0, %c0_i32 : i32, i32
  }
  func.func @transform_8(%arg0: i32) -> (i32, i32) {
    %c0_i32 = arith.constant 0 : i32
    %c0_i32_0 = arith.constant 0 : i32
    return %arg0, %c0_i32 : i32, i32
  }
}

</mosaic_0001>

<llo_original>
// kernel: tpu_custom_call.1
$region0: #{tpu_custom_call.1}
  #allocation0 [shape = 'u32[]', space=smem, size = 0x4, offset = 0x4, fixed_abs, tag = 'smem constant byte address 0x4 - core index']
  #allocation1 [shape = 'u32[72,128]{1,0:T(1,128)}', space=vmem, size = 0x9000, scoped, tag = 'internal scratch']
  %s0 = inlined_call_operand.hbm [shape: bf16[128,128], index: 0, kind: input, shape index: {}]
  %s1 = inlined_call_operand.hbm [shape: bf16[128,128], index: 1, kind: input, shape index: {}]
  %s2 = inlined_call_operand.vmem [shape: f32[1,128], index: 2, kind: input, shape index: {}]
  %s3 = inlined_call_operand.hbm [shape: bf16[128,128], index: 3, kind: input, shape index: {}]
  %s4 = inlined_call_operand.vmem [shape: f32[1,128], index: 4, kind: input, shape index: {}]
  %s5 = inlined_call_operand.hbm [shape: bf16[128,128], index: 5, kind: input, shape index: {}]
  %s6 = inlined_call_operand.vmem [shape: f32[1,128], index: 6, kind: input, shape index: {}]
  %s7 = inlined_call_operand.hbm [shape: f32[128,128], index: 7, kind: output, shape index: {0}]
  %s8 = inlined_call_operand.hbm [shape: f32[128,128], index: 8, kind: output, shape index: {1}]
  %9 = xla_tuple %s7, %s8
  %s10 = sld [smem:[#allocation0]]
  $region62: #{tpu_custom_call.1} parent=0
    _
  %s12 = ssub.s32 1, %s10
  %s13 = scalar_select 0, %s12, %s10
  $region1: #{tpu_custom_call.1} parent=0
    #allocation2 [shape = 'u8[32768]{0}', space=vmem, size = 0x8000, scoped, tag = 'input window, operand 0, single buffered']
    #allocation3 [shape = 's32[1]{0}', space=sflag, size = 0x4, scoped, tag = 'scoped memory for tpu_custom_call.1']
    #allocation4 [shape = 's32[1]{0}', space=sflag, size = 0x4, scoped, tag = 'scoped memory for tpu_custom_call.1']
    #allocation5 [shape = 'u8[32768]{0}', space=vmem, size = 0x8000, scoped, tag = 'input window, operand 1, single buffered']
    #allocation6 [shape = 's32[1]{0}', space=sflag, size = 0x4, scoped, tag = 'scoped memory for tpu_custom_call.1']
    #allocation7 [shape = 'u8[32768]{0}', space=vmem, size = 0x8000, scoped, tag = 'input window, operand 3, single buffered']
    #allocation8 [shape = 'u8[32768]{0}', space=vmem, size = 0x8000, scoped, tag = 'input window, operand 5, single buffered']
    #allocation9 [shape = 's32[1]{0}', space=sflag, size = 0x4, scoped, tag = 'scoped memory for tpu_custom_call.1']
    #allocation10 [shape = 'u8[65536]{0}', space=vmem, size = 0x10000, scoped, tag = 'output window, operand 0, single buffered']
    #allocation11 [shape = 'u8[65536]{0}', space=vmem, size = 0x10000, scoped, tag = 'output window, operand 1, single buffered']
    #allocation12 [shape = 's32[1]{0}', space=sflag, size = 0x4, scoped, tag = 'scoped memory for tpu_custom_call.1']
    %14 = vsyncpa [#allocation3], 0
    %15 = vsyncpa [#allocation6], 0
    %16 = vsyncpa [#allocation9], 0
    %17 = vsyncpa [#allocation4], 0
    %18 = vsyncpa [#allocation12], 0
    // Predicated region
    $region2: #{tpu_custom_call.1} parent=1 // pred_check
      _
    $region3: #{tpu_custom_call.1} parent=1 // pred_check_branch
      %20 = sbr.rel (0) target = $region5
    $region4: #{tpu_custom_call.1} parent=1 // pred_region
      %22 = vsyncadd [#allocation3], 0
      %s23 = sshll.u32 %s0, 4
      %s24 = int_to_ptr.hbm [resolvable:$true] %s23
      %s25 = sshll.u32 [#allocation2], 4
      %s26 = int_to_ptr.vmem [resolvable:$true] %s25
      %31 = dma.hbm_to_vmem [thread:$0]  %s24, 1024, %s26, [#allocation3], 64, 64, 4
    $region5: #{tpu_custom_call.1} parent=1 // pred_fallthru
      _
    // Predicated region
    $region6: #{tpu_custom_call.1} parent=1 // pred_check
      _
    $region7: #{tpu_custom_call.1} parent=1 // pred_check_branch
      %33 = sbr.rel (0) target = $region9
    $region8: #{tpu_custom_call.1} parent=1 // pred_region
      %35 = vsyncadd [#allocation6], 0
      %s36 = sshll.u32 %s1, 4
      %s37 = int_to_ptr.hbm [resolvable:$true] %s36
      %s38 = sshll.u32 [#allocation5], 4
      %s39 = int_to_ptr.vmem [resolvable:$true] %s38
      %44 = dma.hbm_to_vmem [thread:$0]  %s37, 1024, %s39, [#allocation6], 64, 64, 4
    $region9: #{tpu_custom_call.1} parent=1 // pred_fallthru
      _
    // Predicated region
    $region10: #{tpu_custom_call.1} parent=1 // pred_check
      _
    $region11: #{tpu_custom_call.1} parent=1 // pred_check_branch
      %46 = sbr.rel (0) target = $region13
    $region12: #{tpu_custom_call.1} parent=1 // pred_region
      _
    $region13: #{tpu_custom_call.1} parent=1 // pred_fallthru
      _
    // Predicated region
    $region14: #{tpu_custom_call.1} parent=1 // pred_check
      _
    $region15: #{tpu_custom_call.1} parent=1 // pred_check_branch
      %48 = sbr.rel (0) target = $region17
    $region16: #{tpu_custom_call.1} parent=1 // pred_region
      %50 = vsyncadd [#allocation6], 0
      %s51 = sshll.u32 %s3, 4
      %s52 = int_to_ptr.hbm [resolvable:$true] %s51
      %s53 = sshll.u32 [#allocation7], 4
      %s54 = int_to_ptr.vmem [resolvable:$true] %s53
      %59 = dma.hbm_to_vmem [thread:$0]  %s52, 1024, %s54, [#allocation6], 64, 64, 4
    $region17: #{tpu_custom_call.1} parent=1 // pred_fallthru
      _
    // Predicated region
    $region18: #{tpu_custom_call.1} parent=1 // pred_check
      _
    $region19: #{tpu_custom_call.1} parent=1 // pred_check_branch
      %61 = sbr.rel (0) target = $region21
    $region20: #{tpu_custom_call.1} parent=1 // pred_region
      _
    $region21: #{tpu_custom_call.1} parent=1 // pred_fallthru
      _
    // Predicated region
    $region22: #{tpu_custom_call.1} parent=1 // pred_check
      _
    $region23: #{tpu_custom_call.1} parent=1 // pred_check_branch
      %63 = sbr.rel (0) target = $region25
    $region24: #{tpu_custom_call.1} parent=1 // pred_region
      %65 = vsyncadd [#allocation9], 0
      %s66 = sshll.u32 %s5, 4
      %s67 = int_to_ptr.hbm [resolvable:$true] %s66
      %s68 = sshll.u32 [#allocation8], 4
      %s69 = int_to_ptr.vmem [resolvable:$true] %s68
      %74 = dma.hbm_to_vmem [thread:$0]  %s67, 1024, %s69, [#allocation9], 64, 64, 4
    $region25: #{tpu_custom_call.1} parent=1 // pred_fallthru
      _
    // Predicated region
    $region26: #{tpu_custom_call.1} parent=1 // pred_check
      _
    $region27: #{tpu_custom_call.1} parent=1 // pred_check_branch
      %76 = sbr.rel (0) target = $region29
    $region28: #{tpu_custom_call.1} parent=1 // pred_region
      _
    $region29: #{tpu_custom_call.1} parent=1 // pred_fallthru
      _
    // Predicated region
    $region30: #{tpu_custom_call.1} parent=1 // pred_check
      _
    $region31: #{tpu_custom_call.1} parent=1 // pred_check_branch
      %78 = sbr.rel (0) target = $region33
    $region32: #{tpu_custom_call.1} parent=1 // pred_region
      %80 = dma.done [#allocation3], 1024
    $region33: #{tpu_custom_call.1} parent=1 // pred_fallthru
      _
    // Predicated region
    $region34: #{tpu_custom_call.1} parent=1 // pred_check
      _
    $region35: #{tpu_custom_call.1} parent=1 // pred_check_branch
      %82 = sbr.rel (0) target = $region37
    $region36: #{tpu_custom_call.1} parent=1 // pred_region
      %84 = dma.done [#allocation6], 1024
    $region37: #{tpu_custom_call.1} parent=1 // pred_fallthru
      _
    // Predicated region
    $region38: #{tpu_custom_call.1} parent=1 // pred_check
      _
    $region39: #{tpu_custom_call.1} parent=1 // pred_check_branch
      %86 = sbr.rel (0) target = $region41
    $region40: #{tpu_custom_call.1} parent=1 // pred_region
      %88 = dma.done [#allocation6], 1024
    $region41: #{tpu_custom_call.1} parent=1 // pred_fallthru
      _
    // Predicated region
    $region42: #{tpu_custom_call.1} parent=1 // pred_check
      _
    $region43: #{tpu_custom_call.1} parent=1 // pred_check_branch
      %90 = sbr.rel (0) target = $region45
    $region44: #{tpu_custom_call.1} parent=1 // pred_region
      %92 = dma.done [#allocation9], 1024
    $region45: #{tpu_custom_call.1} parent=1 // pred_fallthru
      _
    %v93 = vld [vmem:[#allocation2] sm:$0xf]
    %v94 = vld [vmem:[#allocation2 + $0x4] sm:$0xf]
    %v95 = vld [vmem:[#allocation2 + $0x8] sm:$0xf]
    %v96 = vld [vmem:[#allocation2 + $0xc] sm:$0xf]
    %v97 = vld [vmem:[#allocation2 + $0x10] sm:$0xf]
    %v98 = vld [vmem:[#allocation2 + $0x14] sm:$0xf]
    %v99 = vld [vmem:[#allocation2 + $0x18] sm:$0xf]
    %v100 = vld [vmem:[#allocation2 + $0x1c] sm:$0xf]
    %v101 = vld [vmem:[#allocation2 + $0x20] sm:$0xf]
    %v102 = vld [vmem:[#allocation2 + $0x24] sm:$0xf]
    %v103 = vld [vmem:[#allocation2 + $0x28] sm:$0xf]
    %v104 = vld [vmem:[#allocation2 + $0x2c] sm:$0xf]
    %v105 = vld [vmem:[#allocation2 + $0x30] sm:$0xf]
    %v106 = vld [vmem:[#allocation2 + $0x34] sm:$0xf]
    %v107 = vld [vmem:[#allocation2 + $0x38] sm:$0xf]
    %v108 = vld [vmem:[#allocation2 + $0x3c] sm:$0xf]
    %v109 = vld [vmem:[#allocation5] sm:$0xf]
    %v110 = vld [vmem:[#allocation5 + $0x4] sm:$0xf]
    %v111 = vld [vmem:[#allocation5 + $0x8] sm:$0xf]
    %v112 = vld [vmem:[#allocation5 + $0xc] sm:$0xf]
    %v113 = vld [vmem:[#allocation5 + $0x10] sm:$0xf]
    %v114 = vld [vmem:[#allocation5 + $0x14] sm:$0xf]
    %v115 = vld [vmem:[#allocation5 + $0x18] sm:$0xf]
    %v116 = vld [vmem:[#allocation5 + $0x1c] sm:$0xf]
    %v117 = vld [vmem:[#allocation5 + $0x20] sm:$0xf]
    %v118 = vld [vmem:[#allocation5 + $0x24] sm:$0xf]
    %v119 = vld [vmem:[#allocation5 + $0x28] sm:$0xf]
    %v120 = vld [vmem:[#allocation5 + $0x2c] sm:$0xf]
    %v121 = vld [vmem:[#allocation5 + $0x30] sm:$0xf]
    %v122 = vld [vmem:[#allocation5 + $0x34] sm:$0xf]
    %v123 = vld [vmem:[#allocation5 + $0x38] sm:$0xf]
    %v124 = vld [vmem:[#allocation5 + $0x3c] sm:$0xf]
    %v125 = vld [vmem:[%s2] sm:$0x1]
    %v127 = vperm.slane %v125, 0
    %v145 = vunpack.c.l.b16 %v93
    %v146 = vunpack.c.l.b16 %v94
    %v147 = vunpack.c.l.b16 %v95
    %v148 = vunpack.c.l.b16 %v96
    %v149 = vunpack.c.l.b16 %v97
    %v150 = vunpack.c.l.b16 %v98
    %v151 = vunpack.c.l.b16 %v99
    %v152 = vunpack.c.l.b16 %v100
    %v153 = vunpack.c.l.b16 %v101
    %v154 = vunpack.c.l.b16 %v102
    %v155 = vunpack.c.l.b16 %v103
    %v156 = vunpack.c.l.b16 %v104
    %v157 = vunpack.c.l.b16 %v105
    %v158 = vunpack.c.l.b16 %v106
    %v159 = vunpack.c.l.b16 %v107
    %v160 = vunpack.c.l.b16 %v108
    %v161 = vpack.c.b16 %v146, %v145
    %v162 = vpack.c.b16 %v148, %v147
    %v163 = vpack.c.b16 %v150, %v149
    %v164 = vpack.c.b16 %v152, %v151
    %v165 = vpack.c.b16 %v154, %v153
    %v166 = vpack.c.b16 %v156, %v155
    %v167 = vpack.c.b16 %v158, %v157
    %v168 = vpack.c.b16 %v160, %v159
    %v193 = vunpack.c.l.b16 %v109
    %v194 = vunpack.c.l.b16 %v110
    %v195 = vunpack.c.l.b16 %v111
    %v196 = vunpack.c.l.b16 %v112
    %v197 = vunpack.c.l.b16 %v113
    %v198 = vunpack.c.l.b16 %v114
    %v199 = vunpack.c.l.b16 %v115
    %v200 = vunpack.c.l.b16 %v116
    %v201 = vunpack.c.l.b16 %v117
    %v202 = vunpack.c.l.b16 %v118
    %v203 = vunpack.c.l.b16 %v119
    %v204 = vunpack.c.l.b16 %v120
    %v205 = vunpack.c.l.b16 %v121
    %v206 = vunpack.c.l.b16 %v122
    %v207 = vunpack.c.l.b16 %v123
    %v208 = vunpack.c.l.b16 %v124
    %v209 = vpack.c.b16 %v194, %v193
    %v210 = vpack.c.b16 %v196, %v195
    %v211 = vpack.c.b16 %v198, %v197
    %v212 = vpack.c.b16 %v200, %v199
    %v213 = vpack.c.b16 %v202, %v201
    %v214 = vpack.c.b16 %v204, %v203
    %v215 = vpack.c.b16 %v206, %v205
    %v216 = vpack.c.b16 %v208, %v207
    %225 = vmatpush.bf16.msra.mxu0 %v216
    %226 = vmatpush.bf16.msra.mxu0 %v215
    %227 = vmatpush.bf16.msra.mxu0 %v214
    %228 = vmatpush.bf16.msra.mxu0 %v213
    %229 = vmatpush.bf16.msra.mxu0 %v212
    %230 = vmatpush.bf16.msra.mxu0 %v211
    %231 = vmatpush.bf16.msra.mxu0 %v210
    %232 = vmatpush.bf16.msra.mxu0 %v209
    %233 = vmatmul.bf16.gmra.mxu0 %v161
    %v234 = vpop.f32.mrf.mxu0
    %v235 = vadd.f32 %v127, %v234
    %v236 = vpop.f32.mrf.mxu0
    %v237 = vadd.f32 %v127, %v236
    %238 = vmatmul.bf16.gmra.mxu0 %v162
    %v239 = vpop.f32.mrf.mxu0
    %v240 = vadd.f32 %v127, %v239
    %v241 = vpop.f32.mrf.mxu0
    %v242 = vadd.f32 %v127, %v241
    %243 = vmatmul.bf16.gmra.mxu0 %v163
    %v244 = vpop.f32.mrf.mxu0
    %v245 = vadd.f32 %v127, %v244
    %v246 = vpop.f32.mrf.mxu0
    %v247 = vadd.f32 %v127, %v246
    %248 = vmatmul.bf16.gmra.mxu0 %v164
    %v249 = vpop.f32.mrf.mxu0
    %v250 = vadd.f32 %v127, %v249
    %v251 = vpop.f32.mrf.mxu0
    %v252 = vadd.f32 %v127, %v251
    %253 = vmatmul.bf16.gmra.mxu0 %v165
    %v254 = vpop.f32.mrf.mxu0
    %v255 = vadd.f32 %v127, %v254
    %v256 = vpop.f32.mrf.mxu0
    %v257 = vadd.f32 %v127, %v256
    %258 = vmatmul.bf16.gmra.mxu0 %v166
    %v259 = vpop.f32.mrf.mxu0
    %v260 = vadd.f32 %v127, %v259
    %v261 = vpop.f32.mrf.mxu0
    %v262 = vadd.f32 %v127, %v261
    %263 = vmatmul.bf16.gmra.mxu0 %v167
    %v264 = vpop.f32.mrf.mxu0
    %v265 = vadd.f32 %v127, %v264
    %v266 = vpop.f32.mrf.mxu0
    %v267 = vadd.f32 %v127, %v266
    %268 = vmatmul.bf16.gmra.mxu0 %v168
    %v269 = vpop.f32.mrf.mxu0
    %v270 = vadd.f32 %v127, %v269
    %v271 = vpop.f32.mrf.mxu0
    %v272 = vadd.f32 %v127, %v271
    %273 = vdwg.mxu0
    %v274 = vtanh.pop %v235
    %v275 = vtanh.pop %v237
    %v276 = vtanh.pop %v240
    %v277 = vtanh.pop %v242
    %v278 = vtanh.pop %v245
    %v279 = vtanh.pop %v247
    %v280 = vtanh.pop %v250
    %v281 = vtanh.pop %v252
    %v282 = vtanh.pop %v255
    %v283 = vtanh.pop %v257
    %v284 = vtanh.pop %v260
    %v285 = vtanh.pop %v262
    %v286 = vtanh.pop %v265
    %v287 = vtanh.pop %v267
    %v288 = vtanh.pop %v270
    %v289 = vtanh.pop %v272
    %v290 = vpack.c.bf16 %v275, %v274
    %v291 = vpack.c.bf16 %v277, %v276
    %v292 = vpack.c.bf16 %v279, %v278
    %v293 = vpack.c.bf16 %v281, %v280
    %v294 = vpack.c.bf16 %v283, %v282
    %v295 = vpack.c.bf16 %v285, %v284
    %v296 = vpack.c.bf16 %v287, %v286
    %v297 = vpack.c.bf16 %v289, %v288
    %v298 = vld [vmem:[#allocation7] sm:$0xf]
    %v299 = vld [vmem:[#allocation7 + $0x4] sm:$0xf]
    %v300 = vld [vmem:[#allocation7 + $0x8] sm:$0xf]
    %v301 = vld [vmem:[#allocation7 + $0xc] sm:$0xf]
    %v302 = vld [vmem:[#allocation7 + $0x10] sm:$0xf]
    %v303 = vld [vmem:[#allocation7 + $0x14] sm:$0xf]
    %v304 = vld [vmem:[#allocation7 + $0x18] sm:$0xf]
    %v305 = vld [vmem:[#allocation7 + $0x1c] sm:$0xf]
    %v306 = vld [vmem:[#allocation7 + $0x20] sm:$0xf]
    %v307 = vld [vmem:[#allocation7 + $0x24] sm:$0xf]
    %v308 = vld [vmem:[#allocation7 + $0x28] sm:$0xf]
    %v309 = vld [vmem:[#allocation7 + $0x2c] sm:$0xf]
    %v310 = vld [vmem:[#allocation7 + $0x30] sm:$0xf]
    %v311 = vld [vmem:[#allocation7 + $0x34] sm:$0xf]
    %v312 = vld [vmem:[#allocation7 + $0x38] sm:$0xf]
    %v313 = vld [vmem:[#allocation7 + $0x3c] sm:$0xf]
    %v314 = vld [vmem:[%s4] sm:$0x1]
    %v316 = vperm.slane %v314, 0
    %v334 = vunpack.c.l.b16 %v298
    %v335 = vunpack.c.l.b16 %v299
    %v336 = vunpack.c.l.b16 %v300
    %v337 = vunpack.c.l.b16 %v301
    %v338 = vunpack.c.l.b16 %v302
    %v339 = vunpack.c.l.b16 %v303
    %v340 = vunpack.c.l.b16 %v304
    %v341 = vunpack.c.l.b16 %v305
    %v342 = vunpack.c.l.b16 %v306
    %v343 = vunpack.c.l.b16 %v307
    %v344 = vunpack.c.l.b16 %v308
    %v345 = vunpack.c.l.b16 %v309
    %v346 = vunpack.c.l.b16 %v310
    %v347 = vunpack.c.l.b16 %v311
    %v348 = vunpack.c.l.b16 %v312
    %v349 = vunpack.c.l.b16 %v313
    %v350 = vpack.c.b16 %v335, %v334
    %v351 = vpack.c.b16 %v337, %v336
    %v352 = vpack.c.b16 %v339, %v338
    %v353 = vpack.c.b16 %v341, %v340
    %v354 = vpack.c.b16 %v343, %v342
    %v355 = vpack.c.b16 %v345, %v344
    %v356 = vpack.c.b16 %v347, %v346
    %v357 = vpack.c.b16 %v349, %v348
    %366 = vmatpush.bf16.msra.mxu0 %v357
    %367 = vmatpush.bf16.msra.mxu0 %v356
    %368 = vmatpush.bf16.msra.mxu0 %v355
    %369 = vmatpush.bf16.msra.mxu0 %v354
    %370 = vmatpush.bf16.msra.mxu0 %v353
    %371 = vmatpush.bf16.msra.mxu0 %v352
    %372 = vmatpush.bf16.msra.mxu0 %v351
    %373 = vmatpush.bf16.msra.mxu0 %v350
    %374 = vmatmul.bf16.gmra.mxu0 %v290
    %v375 = vpop.f32.mrf.mxu0
    %v376 = vadd.f32 %v316, %v375
    %v377 = vpop.f32.mrf.mxu0
    %v378 = vadd.f32 %v316, %v377
    %379 = vmatmul.bf16.gmra.mxu0 %v291
    %v380 = vpop.f32.mrf.mxu0
    %v381 = vadd.f32 %v316, %v380
    %v382 = vpop.f32.mrf.mxu0
    %v383 = vadd.f32 %v316, %v382
    %384 = vmatmul.bf16.gmra.mxu0 %v292
    %v385 = vpop.f32.mrf.mxu0
    %v386 = vadd.f32 %v316, %v385
    %v387 = vpop.f32.mrf.mxu0
    %v388 = vadd.f32 %v316, %v387
    %389 = vmatmul.bf16.gmra.mxu0 %v293
    %v390 = vpop.f32.mrf.mxu0
    %v391 = vadd.f32 %v316, %v390
    %v392 = vpop.f32.mrf.mxu0
    %v393 = vadd.f32 %v316, %v392
    %394 = vmatmul.bf16.gmra.mxu0 %v294
    %v395 = vpop.f32.mrf.mxu0
    %v396 = vadd.f32 %v316, %v395
    %v397 = vpop.f32.mrf.mxu0
    %v398 = vadd.f32 %v316, %v397
    %399 = vmatmul.bf16.gmra.mxu0 %v295
    %v400 = vpop.f32.mrf.mxu0
    %v401 = vadd.f32 %v316, %v400
    %v402 = vpop.f32.mrf.mxu0
    %v403 = vadd.f32 %v316, %v402
    %404 = vmatmul.bf16.gmra.mxu0 %v296
    %v405 = vpop.f32.mrf.mxu0
    %v406 = vadd.f32 %v316, %v405
    %v407 = vpop.f32.mrf.mxu0
    %v408 = vadd.f32 %v316, %v407
    %409 = vmatmul.bf16.gmra.mxu0 %v297
    %v410 = vpop.f32.mrf.mxu0
    %v411 = vadd.f32 %v316, %v410
    %v412 = vpop.f32.mrf.mxu0
    %v413 = vadd.f32 %v316, %v412
    %414 = vdwg.mxu0
    %v415 = vtanh.pop %v376
    %v416 = vtanh.pop %v378
    %v417 = vtanh.pop %v381
    %v418 = vtanh.pop %v383
    %v419 = vtanh.pop %v386
    %v420 = vtanh.pop %v388
    %v421 = vtanh.pop %v391
    %v422 = vtanh.pop %v393
    %v423 = vtanh.pop %v396
    %v424 = vtanh.pop %v398
    %v425 = vtanh.pop %v401
    %v426 = vtanh.pop %v403
    %v427 = vtanh.pop %v406
    %v428 = vtanh.pop %v408
    %v429 = vtanh.pop %v411
    %v430 = vtanh.pop %v413
    %v431 = vpack.c.bf16 %v416, %v415
    %v432 = vpack.c.bf16 %v418, %v417
    %v433 = vpack.c.bf16 %v420, %v419
    %v434 = vpack.c.bf16 %v422, %v421
    %v435 = vpack.c.bf16 %v424, %v423
    %v436 = vpack.c.bf16 %v426, %v425
    %v437 = vpack.c.bf16 %v428, %v427
    %v438 = vpack.c.bf16 %v430, %v429
    %v439 = vld [vmem:[#allocation8] sm:$0xf]
    %v440 = vld [vmem:[#allocation8 + $0x4] sm:$0xf]
    %v441 = vld [vmem:[#allocation8 + $0x8] sm:$0xf]
    %v442 = vld [vmem:[#allocation8 + $0xc] sm:$0xf]
    %v443 = vld [vmem:[#allocation8 + $0x10] sm:$0xf]
    %v444 = vld [vmem:[#allocation8 + $0x14] sm:$0xf]
    %v445 = vld [vmem:[#allocation8 + $0x18] sm:$0xf]
    %v446 = vld [vmem:[#allocation8 + $0x1c] sm:$0xf]
    %v447 = vld [vmem:[#allocation8 + $0x20] sm:$0xf]
    %v448 = vld [vmem:[#allocation8 + $0x24] sm:$0xf]
    %v449 = vld [vmem:[#allocation8 + $0x28] sm:$0xf]
    %v450 = vld [vmem:[#allocation8 + $0x2c] sm:$0xf]
    %v451 = vld [vmem:[#allocation8 + $0x30] sm:$0xf]
    %v452 = vld [vmem:[#allocation8 + $0x34] sm:$0xf]
    %v453 = vld [vmem:[#allocation8 + $0x38] sm:$0xf]
    %v454 = vld [vmem:[#allocation8 + $0x3c] sm:$0xf]
    %v455 = vld [vmem:[%s6] sm:$0x1]
    %v457 = vperm.slane %v455, 0
    %v475 = vunpack.c.l.b16 %v439
    %v476 = vunpack.c.l.b16 %v440
    %v477 = vunpack.c.l.b16 %v441
    %v478 = vunpack.c.l.b16 %v442
    %v479 = vunpack.c.l.b16 %v443
    %v480 = vunpack.c.l.b16 %v444
    %v481 = vunpack.c.l.b16 %v445
    %v482 = vunpack.c.l.b16 %v446
    %v483 = vunpack.c.l.b16 %v447
    %v484 = vunpack.c.l.b16 %v448
    %v485 = vunpack.c.l.b16 %v449
    %v486 = vunpack.c.l.b16 %v450
    %v487 = vunpack.c.l.b16 %v451
    %v488 = vunpack.c.l.b16 %v452
    %v489 = vunpack.c.l.b16 %v453
    %v490 = vunpack.c.l.b16 %v454
    %v491 = vpack.c.b16 %v476, %v475
    %v492 = vpack.c.b16 %v478, %v477
    %v493 = vpack.c.b16 %v480, %v479
    %v494 = vpack.c.b16 %v482, %v481
    %v495 = vpack.c.b16 %v484, %v483
    %v496 = vpack.c.b16 %v486, %v485
    %v497 = vpack.c.b16 %v488, %v487
    %v498 = vpack.c.b16 %v490, %v489
    %507 = vmatpush.bf16.msra.mxu0 %v498
    %508 = vmatpush.bf16.msra.mxu0 %v497
    %509 = vmatpush.bf16.msra.mxu0 %v496
    %510 = vmatpush.bf16.msra.mxu0 %v495
    %511 = vmatpush.bf16.msra.mxu0 %v494
    %512 = vmatpush.bf16.msra.mxu0 %v493
    %513 = vmatpush.bf16.msra.mxu0 %v492
    %514 = vmatpush.bf16.msra.mxu0 %v491
    %515 = vmatmul.bf16.gmra.mxu0 %v431
    %v516 = vpop.f32.mrf.mxu0
    %v517 = vadd.f32 %v457, %v516
    %v518 = vpop.f32.mrf.mxu0
    %v519 = vadd.f32 %v457, %v518
    %520 = vmatmul.bf16.gmra.mxu0 %v432
    %v521 = vpop.f32.mrf.mxu0
    %v522 = vadd.f32 %v457, %v521
    %v523 = vpop.f32.mrf.mxu0
    %v524 = vadd.f32 %v457, %v523
    %525 = vmatmul.bf16.gmra.mxu0 %v433
    %v526 = vpop.f32.mrf.mxu0
    %v527 = vadd.f32 %v457, %v526
    %v528 = vpop.f32.mrf.mxu0
    %v529 = vadd.f32 %v457, %v528
    %530 = vmatmul.bf16.gmra.mxu0 %v434
    %v531 = vpop.f32.mrf.mxu0
    %v532 = vadd.f32 %v457, %v531
    %v533 = vpop.f32.mrf.mxu0
    %v534 = vadd.f32 %v457, %v533
    %535 = vmatmul.bf16.gmra.mxu0 %v435
    %v536 = vpop.f32.mrf.mxu0
    %v537 = vadd.f32 %v457, %v536
    %v538 = vpop.f32.mrf.mxu0
    %v539 = vadd.f32 %v457, %v538
    %540 = vmatmul.bf16.gmra.mxu0 %v436
    %v541 = vpop.f32.mrf.mxu0
    %v542 = vadd.f32 %v457, %v541
    %v543 = vpop.f32.mrf.mxu0
    %v544 = vadd.f32 %v457, %v543
    %545 = vmatmul.bf16.gmra.mxu0 %v437
    %v546 = vpop.f32.mrf.mxu0
    %v547 = vadd.f32 %v457, %v546
    %v548 = vpop.f32.mrf.mxu0
    %v549 = vadd.f32 %v457, %v548
    %550 = vmatmul.bf16.gmra.mxu0 %v438
    %v551 = vpop.f32.mrf.mxu0
    %v552 = vadd.f32 %v457, %v551
    %v553 = vpop.f32.mrf.mxu0
    %v554 = vadd.f32 %v457, %v553
    %555 = vdwg.mxu0
    %556 = vst [vmem:[#allocation10] sm:$0xff] %v415
    %557 = vst [vmem:[#allocation10 + $0x8] sm:$0xff] %v416
    %558 = vst [vmem:[#allocation10 + $0x10] sm:$0xff] %v417
    %559 = vst [vmem:[#allocation10 + $0x18] sm:$0xff] %v418
    %560 = vst [vmem:[#allocation10 + $0x20] sm:$0xff] %v419
    %561 = vst [vmem:[#allocation10 + $0x28] sm:$0xff] %v420
    %562 = vst [vmem:[#allocation10 + $0x30] sm:$0xff] %v421
    %563 = vst [vmem:[#allocation10 + $0x38] sm:$0xff] %v422
    %564 = vst [vmem:[#allocation10 + $0x40] sm:$0xff] %v423
    %565 = vst [vmem:[#allocation10 + $0x48] sm:$0xff] %v424
    %566 = vst [vmem:[#allocation10 + $0x50] sm:$0xff] %v425
    %567 = vst [vmem:[#allocation10 + $0x58] sm:$0xff] %v426
    %568 = vst [vmem:[#allocation10 + $0x60] sm:$0xff] %v427
    %569 = vst [vmem:[#allocation10 + $0x68] sm:$0xff] %v428
    %570 = vst [vmem:[#allocation10 + $0x70] sm:$0xff] %v429
    %571 = vst [vmem:[#allocation10 + $0x78] sm:$0xff] %v430
    %572 = vst [vmem:[#allocation11] sm:$0xff] %v517
    %573 = vst [vmem:[#allocation11 + $0x8] sm:$0xff] %v519
    %574 = vst [vmem:[#allocation11 + $0x10] sm:$0xff] %v522
    %575 = vst [vmem:[#allocation11 + $0x18] sm:$0xff] %v524
    %576 = vst [vmem:[#allocation11 + $0x20] sm:$0xff] %v527
    %577 = vst [vmem:[#allocation11 + $0x28] sm:$0xff] %v529
    %578 = vst [vmem:[#allocation11 + $0x30] sm:$0xff] %v532
    %579 = vst [vmem:[#allocation11 + $0x38] sm:$0xff] %v534
    %580 = vst [vmem:[#allocation11 + $0x40] sm:$0xff] %v537
    %581 = vst [vmem:[#allocation11 + $0x48] sm:$0xff] %v539
    %582 = vst [vmem:[#allocation11 + $0x50] sm:$0xff] %v542
    %583 = vst [vmem:[#allocation11 + $0x58] sm:$0xff] %v544
    %584 = vst [vmem:[#allocation11 + $0x60] sm:$0xff] %v547
    %585 = vst [vmem:[#allocation11 + $0x68] sm:$0xff] %v549
    %586 = vst [vmem:[#allocation11 + $0x70] sm:$0xff] %v552
    %587 = vst [vmem:[#allocation11 + $0x78] sm:$0xff] %v554
    // Predicated region
    $region46: #{tpu_custom_call.1} parent=1 // pred_check
      _
    $region47: #{tpu_custom_call.1} parent=1 // pred_check_branch
      %589 = sbr.rel (0) target = $region49
    $region48: #{tpu_custom_call.1} parent=1 // pred_region
      %591 = vsyncadd [#allocation4], 0
      %s592 = sshll.u32 [#allocation10], 4
      %s593 = int_to_ptr.vmem [resolvable:$true] %s592
      %s594 = sshll.u32 %s7, 4
      %s595 = int_to_ptr.hbm [resolvable:$true] %s594
      %600 = dma.vmem_to_hbm [thread:$0]  %s593, 2048, %s595, [#allocation4], 128, 128, 8
    $region49: #{tpu_custom_call.1} parent=1 // pred_fallthru
      _
    // Predicated region
    $region50: #{tpu_custom_call.1} parent=1 // pred_check
      _
    $region51: #{tpu_custom_call.1} parent=1 // pred_check_branch
      %602 = sbr.rel (0) target = $region53
    $region52: #{tpu_custom_call.1} parent=1 // pred_region
      %604 = vsyncadd [#allocation12], 0
      %s605 = sshll.u32 [#allocation11], 4
      %s606 = int_to_ptr.vmem [resolvable:$true] %s605
      %s607 = sshll.u32 %s8, 4
      %s608 = int_to_ptr.hbm [resolvable:$true] %s607
      %613 = dma.vmem_to_hbm [thread:$0]  %s606, 2048, %s608, [#allocation12], 128, 128, 8
    $region53: #{tpu_custom_call.1} parent=1 // pred_fallthru
      _
    // Predicated region
    $region54: #{tpu_custom_call.1} parent=1 // pred_check
      _
    $region55: #{tpu_custom_call.1} parent=1 // pred_check_branch
      %615 = sbr.rel (0) target = $region57
    $region56: #{tpu_custom_call.1} parent=1 // pred_region
      %617 = dma.done [#allocation4], 2048
    $region57: #{tpu_custom_call.1} parent=1 // pred_fallthru
      _
    // Predicated region
    $region58: #{tpu_custom_call.1} parent=1 // pred_check
      _
    $region59: #{tpu_custom_call.1} parent=1 // pred_check_branch
      %619 = sbr.rel (0) target = $region61
    $region60: #{tpu_custom_call.1} parent=1 // pred_region
      %621 = dma.done [#allocation12], 2048
    $region61: #{tpu_custom_call.1} parent=1 // pred_fallthru
      _
    %622 = vsyncpa [#allocation3], 1
    %623 = vsyncpa [#allocation6], 1
    %624 = vsyncpa [#allocation9], 1
    %625 = vsyncpa [#allocation4], 1
    %626 = vsyncpa [#allocation12], 1

</llo_original>
